<compile_context>
chip_gen: v7x
topology: tpu7x:2x2x1
jax: 0.10.0
libtpu: 0.0.40
codegen_flags: <defaults>
</compile_context>

<pallas_src>
import jax
import jax.numpy as jnp
from jax.experimental import pallas as pl
from jax.experimental.pallas import tpu as pltpu
import numpy as np

embedding_dim = 50
margin = 1.0
num_entities = 5
num_relations = 2


def _round_up(x, m):
    return ((x + m - 1) // m) * m


def _transh_kernel(idx_ref, ent_tab_ref, rel_tab_ref, out_ref):
    tb = out_ref.shape[1]
    n_rows = ent_tab_ref.shape[1]            # == rel_tab_ref.shape[1]
    d_pad = ent_tab_ref.shape[0] // 2

    # One shared selector iota (rows = table entry, lanes = batch).
    row_ids = jax.lax.broadcasted_iota(jnp.int32, (n_rows, tb), 0)
    oh_h = (idx_ref[0:1, :] == row_ids).astype(jnp.float32)   # (rows, TB)
    oh_r = (idx_ref[1:2, :] == row_ids).astype(jnp.float32)
    oh_t = (idx_ref[2:3, :] == row_ids).astype(jnp.float32)

    # Fused gather on the otherwise idle MXU: one matmul per (emb; normal)
    # stacked table -> (2*D_pad, TB) = [x; x_normal] columns per batch lane.
    h_hn = jnp.dot(ent_tab_ref[...], oh_h, preferred_element_type=jnp.float32)
    t_tn = jnp.dot(ent_tab_ref[...], oh_t, preferred_element_type=jnp.float32)
    r_rn = jnp.dot(rel_tab_ref[...], oh_r, preferred_element_type=jnp.float32)

    # Static, sublane-tile-aligned splits (d_pad is a multiple of 8).
    h, hn = h_hn[:d_pad, :], h_hn[d_pad:, :]
    t, tn = t_tn[:d_pad, :], t_tn[d_pad:, :]
    r, rn = r_rn[:d_pad, :], r_rn[d_pad:, :]

    # TransH hyperplane projections; D reductions run along sublanes.
    h_proj = h - jnp.sum(h * hn, axis=0, keepdims=True) * hn
    t_proj = t - jnp.sum(t * tn, axis=0, keepdims=True) * tn
    r_proj = r - jnp.sum(r * rn, axis=0, keepdims=True) * rn

    diff = h_proj + r_proj - t_proj
    # Lane-dense (1, TB) score store.
    out_ref[...] = jnp.sqrt(jnp.sum(diff * diff, axis=0, keepdims=True))


def transh_scores_pallas(h_idx, r_idx, t_idx, ent_tab, rel_tab, *, tb=2048):
    """Indices: (B,) int.  Tables: (2*D_pad, rows_pad) f32, zero-padded and
    transposed, rows_pad identical for both tables.  Returns (B,) f32."""
    B = int(h_idx.shape[0])
    two_d_pad, rows_pad = ent_tab.shape
    assert rel_tab.shape == (two_d_pad, rows_pad)

    # Batch tile: lane-aligned, no larger than needed, and >= 2 grid steps for
    # big batches so v7x's two TensorCores both get work (batch axis parallel).
    b_ceil = _round_up(max(B, 1), 128)
    tb = min(int(tb), b_ceil)
    tb = max(128, (tb // 128) * 128)
    if B >= 256 and tb >= b_ceil:
        tb = max(128, _round_up(b_ceil // 2, 128))
    b_pad = _round_up(B, tb)

    # Pack h/r/t index streams into one (3, B_pad) int32 array (single DMA).
    idx = jnp.stack([h_idx, r_idx, t_idx]).astype(jnp.int32)       # (3, B)
    idx = jnp.pad(idx, ((0, 0), (0, b_pad - B)))                   # pad w/ idx 0

    idx_spec = pl.BlockSpec((3, tb), lambda i: (0, i))
    ent_spec = pl.BlockSpec((two_d_pad, rows_pad), lambda i: (0, 0))
    rel_spec = pl.BlockSpec((two_d_pad, rows_pad), lambda i: (0, 0))
    out_spec = pl.BlockSpec((1, tb), lambda i: (0, i))

    d_pad = two_d_pad // 2
    cost = pl.CostEstimate(
        flops=int(b_pad * (3 * 2 * two_d_pad * rows_pad + 12 * d_pad)),
        transcendentals=int(b_pad),
        bytes_accessed=int(3 * b_pad * 4                     # packed indices
                           + 2 * two_d_pad * rows_pad * 4    # resident tables
                           + b_pad * 4),                     # scores out
    )

    out = pl.pallas_call(
        _transh_kernel,
        out_shape=jax.ShapeDtypeStruct((1, b_pad), jnp.float32),
        grid=(b_pad // tb,),
        in_specs=[idx_spec, ent_spec, rel_spec],
        out_specs=out_spec,
        compiler_params=pltpu.CompilerParams(
            dimension_semantics=("parallel",)),
        cost_estimate=cost,
    )(idx, ent_tab, rel_tab)
    return out[0, :B]


def xavier_uniform(key, fan_out, fan_in):
    # Matches nn.init.xavier_uniform_ for a (fan_out, fan_in) weight.
    a = float(np.sqrt(6.0 / (fan_in + fan_out)))
    return jax.random.uniform(key, (fan_out, fan_in), jnp.float32, -a, a)


def _stack_pad_transpose(emb, nv, rows_pad, d_pad):
    """Build a (2*d_pad, rows_pad) table: [emb^T ; nv^T], zero-padded."""
    n, d = emb.shape
    tab = jnp.zeros((rows_pad, 2 * d_pad), jnp.float32)
    tab = tab.at[:n, :d].set(emb)
    tab = tab.at[:n, d_pad:d_pad + d].set(nv)
    return jnp.transpose(tab)


class TransHPallas:
    def __init__(self, num_entities, num_relations, embedding_dim, margin, key):
        k1, k2, k3, k4 = jax.random.split(key, 4)
        self.margin = margin                      # kept for parity (unused in forward)
        self.embedding_dim = embedding_dim
        self.entity_embeddings = xavier_uniform(k1, num_entities, embedding_dim)
        self.relation_embeddings = xavier_uniform(k2, num_relations, embedding_dim)
        self.entity_normal_vectors = xavier_uniform(k3, num_entities, embedding_dim)
        self.relation_normal_vectors = xavier_uniform(k4, num_relations, embedding_dim)

        d_pad = _round_up(embedding_dim, 8)       # sublane-only padding (50 -> 56)
        rows_pad = _round_up(max(num_entities, num_relations), 8)  # shared iota
        self._ent_tab = _stack_pad_transpose(
            self.entity_embeddings, self.entity_normal_vectors, rows_pad, d_pad)
        self._rel_tab = _stack_pad_transpose(
            self.relation_embeddings, self.relation_normal_vectors, rows_pad, d_pad)

    def forward(self, head_entities, relations, tail_entities):
        return transh_scores_pallas(
            head_entities, relations, tail_entities,
            self._ent_tab, self._rel_tab)


def reference_forward(model, head_entities, relations, tail_entities):
    h = jnp.take(model.entity_embeddings, head_entities, axis=0)
    r = jnp.take(model.relation_embeddings, relations, axis=0)
    t = jnp.take(model.entity_embeddings, tail_entities, axis=0)
    hn = jnp.take(model.entity_normal_vectors, head_entities, axis=0)
    rn = jnp.take(model.relation_normal_vectors, relations, axis=0)
    tn = jnp.take(model.entity_normal_vectors, tail_entities, axis=0)
    h_proj = h - jnp.sum(h * hn, -1, keepdims=True) * hn
    t_proj = t - jnp.sum(t * tn, -1, keepdims=True) * tn
    r_proj = r - jnp.sum(r * rn, -1, keepdims=True) * rn
    return jnp.linalg.norm(h_proj + r_proj - t_proj, axis=-1)


if __name__ == "__main__":
    key = jax.random.PRNGKey(0)
    k_model, k_h, k_r, k_t = jax.random.split(key, 4)

    model = TransHPallas(num_entities, num_relations, embedding_dim, margin, k_model)

    batch = 8
    head_entities = jax.random.randint(k_h, (batch,), 0, num_entities)
    relations = jax.random.randint(k_r, (batch,), 0, num_relations)
    tail_entities = jax.random.randint(k_t, (batch,), 0, num_entities)

    scores = model.forward(head_entities, relations, tail_entities)
    scores = jax.block_until_ready(scores)

    ref = reference_forward(model, head_entities, relations, tail_entities)
    np.testing.assert_allclose(np.asarray(scores), np.asarray(ref),
                               rtol=1e-5, atol=1e-5)

    print("KERNEL_OK")
</pallas_src>

<mosaic_0001>
module attributes {stable_mosaic.version = 11 : i64} {
  func.func @_transh_kernel(%arg0: i32, %arg1: memref<3x128xi32, #tpu.memory_space<vmem>>, %arg2: memref<112x8xf32, #tpu.memory_space<vmem>>, %arg3: memref<112x8xf32, #tpu.memory_space<vmem>>, %arg4: memref<1x128xf32, #tpu.memory_space<vmem>>) attributes {dimension_semantics = [#tpu.dimension_semantics<parallel>], iteration_bounds = array<i64: 1>, scalar_prefetch = 0 : i64, scratch_operands = 0 : i64, tpu.core_type = #tpu.core_type<tc>, window_params = [{transform_indices = @transform_0, window_bounds = array<i64: 3, 128>}, {pipeline_mode = #tpu.pipeline_mode<synchronous>, transform_indices = @transform_1, window_bounds = array<i64: 112, 8>}, {pipeline_mode = #tpu.pipeline_mode<synchronous>, transform_indices = @transform_2, window_bounds = array<i64: 112, 8>}, {transform_indices = @transform_3, window_bounds = array<i64: 1, 128>}]} {
    %0 = tpu.iota {dimensions = array<i32: 0>} : vector<8x128xi32>
    %c0 = arith.constant 0 : index
    %c0_0 = arith.constant 0 : index
    %1 = vector.load %arg1[%c0, %c0_0] : memref<3x128xi32, #tpu.memory_space<vmem>>, vector<1x128xi32>
    %2 = vector.broadcast %1 : vector<1x128xi32> to vector<8x128xi32>
    %3 = arith.cmpi eq, %2, %0 : vector<8x128xi32>
    %4 = arith.extui %3 : vector<8x128xi1> to vector<8x128xi32>
    %5 = arith.sitofp %4 : vector<8x128xi32> to vector<8x128xf32>
    %c1 = arith.constant 1 : index
    %c0_1 = arith.constant 0 : index
    %6 = vector.load %arg1[%c1, %c0_1] : memref<3x128xi32, #tpu.memory_space<vmem>>, vector<1x128xi32>
    %7 = vector.broadcast %6 : vector<1x128xi32> to vector<8x128xi32>
    %8 = arith.cmpi eq, %7, %0 : vector<8x128xi32>
    %9 = arith.extui %8 : vector<8x128xi1> to vector<8x128xi32>
    %10 = arith.sitofp %9 : vector<8x128xi32> to vector<8x128xf32>
    %c2 = arith.constant 2 : index
    %c0_2 = arith.constant 0 : index
    %11 = vector.load %arg1[%c2, %c0_2] : memref<3x128xi32, #tpu.memory_space<vmem>>, vector<1x128xi32>
    %12 = vector.broadcast %11 : vector<1x128xi32> to vector<8x128xi32>
    %13 = arith.cmpi eq, %12, %0 : vector<8x128xi32>
    %14 = arith.extui %13 : vector<8x128xi1> to vector<8x128xi32>
    %15 = arith.sitofp %14 : vector<8x128xi32> to vector<8x128xf32>
    %c0_3 = arith.constant 0 : index
    %c0_4 = arith.constant 0 : index
    %16 = vector.load %arg2[%c0_3, %c0_4] : memref<112x8xf32, #tpu.memory_space<vmem>>, vector<112x8xf32>
    %cst = arith.constant dense<0.000000e+00> : vector<112x128xf32>
    %17 = tpu.matmul %16, %5, %cst {dimension_numbers = #tpu.dot_dimension_numbers<[1], [0], [0], [1], [0, 0, 1, 1], [], []>} : vector<112x8xf32>, vector<8x128xf32>, vector<112x128xf32> -> vector<112x128xf32>
    %c0_5 = arith.constant 0 : index
    %c0_6 = arith.constant 0 : index
    %18 = vector.load %arg2[%c0_5, %c0_6] : memref<112x8xf32, #tpu.memory_space<vmem>>, vector<112x8xf32>
    %cst_7 = arith.constant dense<0.000000e+00> : vector<112x128xf32>
    %19 = tpu.matmul %18, %15, %cst_7 {dimension_numbers = #tpu.dot_dimension_numbers<[1], [0], [0], [1], [0, 0, 1, 1], [], []>} : vector<112x8xf32>, vector<8x128xf32>, vector<112x128xf32> -> vector<112x128xf32>
    %c0_8 = arith.constant 0 : index
    %c0_9 = arith.constant 0 : index
    %20 = vector.load %arg3[%c0_8, %c0_9] : memref<112x8xf32, #tpu.memory_space<vmem>>, vector<112x8xf32>
    %cst_10 = arith.constant dense<0.000000e+00> : vector<112x128xf32>
    %21 = tpu.matmul %20, %10, %cst_10 {dimension_numbers = #tpu.dot_dimension_numbers<[1], [0], [0], [1], [0, 0, 1, 1], [], []>} : vector<112x8xf32>, vector<8x128xf32>, vector<112x128xf32> -> vector<112x128xf32>
    %22 = vector.extract_strided_slice %17 {offsets = [0, 0], sizes = [56, 128], strides = [1, 1]} : vector<112x128xf32> to vector<56x128xf32>
    %23 = vector.extract_strided_slice %17 {offsets = [56, 0], sizes = [56, 128], strides = [1, 1]} : vector<112x128xf32> to vector<56x128xf32>
    %24 = vector.extract_strided_slice %19 {offsets = [0, 0], sizes = [56, 128], strides = [1, 1]} : vector<112x128xf32> to vector<56x128xf32>
    %25 = vector.extract_strided_slice %19 {offsets = [56, 0], sizes = [56, 128], strides = [1, 1]} : vector<112x128xf32> to vector<56x128xf32>
    %26 = vector.extract_strided_slice %21 {offsets = [0, 0], sizes = [56, 128], strides = [1, 1]} : vector<112x128xf32> to vector<56x128xf32>
    %27 = vector.extract_strided_slice %21 {offsets = [56, 0], sizes = [56, 128], strides = [1, 1]} : vector<112x128xf32> to vector<56x128xf32>
    %28 = arith.mulf %22, %23 : vector<56x128xf32>
    %cst_11 = arith.constant dense<0.000000e+00> : vector<128xf32>
    %29 = vector.multi_reduction <add>, %28, %cst_11 [0] : vector<56x128xf32> to vector<128xf32>
    %30 = vector.shape_cast %29 : vector<128xf32> to vector<1x128xf32>
    %31 = vector.broadcast %30 : vector<1x128xf32> to vector<56x128xf32>
    %32 = arith.mulf %31, %23 : vector<56x128xf32>
    %33 = arith.subf %22, %32 : vector<56x128xf32>
    %34 = arith.mulf %24, %25 : vector<56x128xf32>
    %cst_12 = arith.constant dense<0.000000e+00> : vector<128xf32>
    %35 = vector.multi_reduction <add>, %34, %cst_12 [0] : vector<56x128xf32> to vector<128xf32>
    %36 = vector.shape_cast %35 : vector<128xf32> to vector<1x128xf32>
    %37 = vector.broadcast %36 : vector<1x128xf32> to vector<56x128xf32>
    %38 = arith.mulf %37, %25 : vector<56x128xf32>
    %39 = arith.subf %24, %38 : vector<56x128xf32>
    %40 = arith.mulf %26, %27 : vector<56x128xf32>
    %cst_13 = arith.constant dense<0.000000e+00> : vector<128xf32>
    %41 = vector.multi_reduction <add>, %40, %cst_13 [0] : vector<56x128xf32> to vector<128xf32>
    %42 = vector.shape_cast %41 : vector<128xf32> to vector<1x128xf32>
    %43 = vector.broadcast %42 : vector<1x128xf32> to vector<56x128xf32>
    %44 = arith.mulf %43, %27 : vector<56x128xf32>
    %45 = arith.subf %26, %44 : vector<56x128xf32>
    %46 = arith.addf %33, %45 : vector<56x128xf32>
    %47 = arith.subf %46, %39 : vector<56x128xf32>
    %48 = arith.mulf %47, %47 : vector<56x128xf32>
    %cst_14 = arith.constant dense<0.000000e+00> : vector<128xf32>
    %49 = vector.multi_reduction <add>, %48, %cst_14 [0] : vector<56x128xf32> to vector<128xf32>
    %50 = vector.shape_cast %49 : vector<128xf32> to vector<1x128xf32>
    %51 = math.sqrt %50 : vector<1x128xf32>
    %c0_15 = arith.constant 0 : index
    %c0_16 = arith.constant 0 : index
    %52 = vector.load %arg4[%c0_15, %c0_16] : memref<1x128xf32, #tpu.memory_space<vmem>>, vector<1x128xf32>
    tpu.vector_store %arg4[%c0_15, %c0_16], %51 {strides = array<i32>} : memref<1x128xf32, #tpu.memory_space<vmem>>, vector<1x128xf32>,
    return
  }
  func.func @transform_0(%arg0: i32) -> (i32, i32) {
    %c0_i32 = arith.constant 0 : i32
    %c0_i32_0 = arith.constant 0 : i32
    return %c0_i32, %arg0 : i32, i32
  }
  func.func @transform_1(%arg0: i32) -> (i32, i32) {
    %c0_i32 = arith.constant 0 : i32
    %c0_i32_0 = arith.constant 0 : i32
    %c0_i32_1 = arith.constant 0 : i32
    return %c0_i32, %c0_i32_0 : i32, i32
  }
  func.func @transform_2(%arg0: i32) -> (i32, i32) {
    %c0_i32 = arith.constant 0 : i32
    %c0_i32_0 = arith.constant 0 : i32
    %c0_i32_1 = arith.constant 0 : i32
    return %c0_i32, %c0_i32_0 : i32, i32
  }
  func.func @transform_3(%arg0: i32) -> (i32, i32) {
    %c0_i32 = arith.constant 0 : i32
    %c0_i32_0 = arith.constant 0 : i32
    return %c0_i32, %arg0 : i32, i32
  }
}

</mosaic_0001>

<llo_original>
// kernel: tpu_custom_call.1
$region0: #{tpu_custom_call.1}
  #allocation0 [shape = 'u32[]', space=smem, size = 0x4, offset = 0x4, fixed_abs, tag = 'smem constant byte address 0x4 - core index']
  #allocation1 [shape = 'u32[144,128]{1,0:T(1,128)}', space=vmem, size = 0x12000, scoped, tag = 'internal scratch']
  %s0 = inlined_call_operand.vmem [shape: s32[3,128], index: 0, kind: input, shape index: {}]
  %s1 = inlined_call_operand.vmem [shape: f32[112,8], index: 1, kind: input, shape index: {}]
  %s2 = inlined_call_operand.vmem [shape: f32[112,8], index: 2, kind: input, shape index: {}]
  %s3 = inlined_call_operand.hbm [shape: f32[1,128], index: 3, kind: output, shape index: {}]
  %s4 = sld [smem:[#allocation0]]
  $region22: #{tpu_custom_call.1} parent=0
    _
  %s6 = ssub.s32 1, %s4
  %s7 = scalar_select 0, %s6, %s4
  $region1: #{tpu_custom_call.1} parent=0
    #allocation2 [shape = 'u8[512]{0}', space=vmem, size = 0x400, scoped, tag = 'output window, operand 0, single buffered']
    #allocation3 [shape = 's32[1]{0}', space=sflag, size = 0x4, scoped, tag = 'scoped memory for tpu_custom_call.1']
    %8 = vsyncpa [#allocation3], 0
    // Predicated region
    $region2: #{tpu_custom_call.1} parent=1 // pred_check
      _
    $region3: #{tpu_custom_call.1} parent=1 // pred_check_branch
      %10 = sbr.rel (0) target = $region5
    $region4: #{tpu_custom_call.1} parent=1 // pred_region
      _
    $region5: #{tpu_custom_call.1} parent=1 // pred_fallthru
      _
    // Predicated region
    $region6: #{tpu_custom_call.1} parent=1 // pred_check
      _
    $region7: #{tpu_custom_call.1} parent=1 // pred_check_branch
      %12 = sbr.rel (0) target = $region9
    $region8: #{tpu_custom_call.1} parent=1 // pred_region
      _
    $region9: #{tpu_custom_call.1} parent=1 // pred_fallthru
      _
    // Predicated region
    $region10: #{tpu_custom_call.1} parent=1 // pred_check
      _
    $region11: #{tpu_custom_call.1} parent=1 // pred_check_branch
      %14 = sbr.rel (0) target = $region13
    $region12: #{tpu_custom_call.1} parent=1 // pred_region
      _
    $region13: #{tpu_custom_call.1} parent=1 // pred_fallthru
      _
    %v15 = vlaneseq
    %v16 = vshrl.u32 %v15, 7
    %v17 = vld [vmem:[%s0] sm:$0x1]
    %v18 = vlaneseq
    %v19 = vshrl.u32 %v18, 7
    %v20 = vsub.s32 0, %v19
    %v21 = vrot.slane %v17, %v20
    %vm22 = vcmp.eq.s32.totalorder %v21, %v16
    %v23 = vsel %vm22, 1, 0
    %v24 = vcvt.s32.f32 %v23
    %v25 = vld [vmem:[%s0 + $0x1] sm:$0x1]
    %v26 = vlaneseq
    %v27 = vshrl.u32 %v26, 7
    %v28 = vsub.s32 0, %v27
    %v29 = vrot.slane %v25, %v28
    %vm30 = vcmp.eq.s32.totalorder %v29, %v16
    %v31 = vsel %vm30, 1, 0
    %v32 = vcvt.s32.f32 %v31
    %v33 = vld [vmem:[%s0 + $0x2] sm:$0x1]
    %v34 = vlaneseq
    %v35 = vshrl.u32 %v34, 7
    %v36 = vsub.s32 0, %v35
    %v37 = vrot.slane %v33, %v36
    %vm38 = vcmp.eq.s32.totalorder %v37, %v16
    %v39 = vsel %vm38, 1, 0
    %v40 = vcvt.s32.f32 %v39
    %v41 = vld [vmem:[%s1] sm:$0xff]
    %v42 = vld [vmem:[%s1 + $0x8] sm:$0xff]
    %v43 = vld [vmem:[%s1 + $0x10] sm:$0xff]
    %v44 = vld [vmem:[%s1 + $0x18] sm:$0xff]
    %v45 = vld [vmem:[%s1 + $0x20] sm:$0xff]
    %v46 = vld [vmem:[%s1 + $0x28] sm:$0xff]
    %v47 = vld [vmem:[%s1 + $0x30] sm:$0xff]
    %v48 = vld [vmem:[%s1 + $0x38] sm:$0xff]
    %v49 = vld [vmem:[%s1 + $0x40] sm:$0xff]
    %v50 = vld [vmem:[%s1 + $0x48] sm:$0xff]
    %v51 = vld [vmem:[%s1 + $0x50] sm:$0xff]
    %v52 = vld [vmem:[%s1 + $0x58] sm:$0xff]
    %v53 = vld [vmem:[%s1 + $0x60] sm:$0xff]
    %v54 = vld [vmem:[%s1 + $0x68] sm:$0xff]
    %vm55 = vcmask 64512
    %v57 = vsel %vm55, %v41, 0
    %v60 = vsel %vm55, %v42, 0
    %v63 = vsel %vm55, %v43, 0
    %v66 = vsel %vm55, %v44, 0
    %v69 = vsel %vm55, %v45, 0
    %v72 = vsel %vm55, %v46, 0
    %v75 = vsel %vm55, %v47, 0
    %v78 = vsel %vm55, %v48, 0
    %v81 = vsel %vm55, %v49, 0
    %v84 = vsel %vm55, %v50, 0
    %v87 = vsel %vm55, %v51, 0
    %v90 = vsel %vm55, %v52, 0
    %v93 = vsel %vm55, %v53, 0
    %v96 = vsel %vm55, %v54, 0
    %98 = vmatprep.subr.mxu0 0.0
    %99 = vmatpush1.msra.mxu0 %v24
    %100 = vmatprep.subr.mxu0 0.0
    %101 = vmatpush1.msra.mxu0 0.0
    %102 = vmatprep.subr.mxu0 0.0
    %103 = vmatpush1.msra.mxu0 0.0
    %104 = vmatprep.subr.mxu0 0.0
    %105 = vmatpush1.msra.mxu0 0.0
    %106 = vmatprep.subr.mxu0 0.0
    %107 = vmatpush1.msra.mxu0 0.0
    %108 = vmatprep.subr.mxu0 0.0
    %109 = vmatpush1.msra.mxu0 0.0
    %110 = vmatprep.subr.mxu0 0.0
    %111 = vmatpush1.msra.mxu0 0.0
    %112 = vmatprep.subr.mxu0 0.0
    %113 = vmatpush1.msra.mxu0 0.0
    %114 = vmatprep.subr.mxu0 0.0
    %115 = vmatpush1.msra.mxu0 0.0
    %116 = vmatprep.subr.mxu0 0.0
    %117 = vmatpush1.msra.mxu0 0.0
    %118 = vmatprep.subr.mxu0 0.0
    %119 = vmatpush1.msra.mxu0 0.0
    %120 = vmatprep.subr.mxu0 0.0
    %121 = vmatpush1.msra.mxu0 0.0
    %122 = vmatprep.subr.mxu0 0.0
    %123 = vmatpush1.msra.mxu0 0.0
    %124 = vmatprep.subr.mxu0 0.0
    %125 = vmatpush1.msra.mxu0 0.0
    %126 = vmatprep.subr.mxu0 0.0
    %127 = vmatpush1.msra.mxu0 0.0
    %128 = vmatprep.subr.mxu0 0.0
    %129 = vmatpush1.msra.mxu0 0.0
    %130 = vmatprep.subr.mxu0 0.0
    %131 = vmatpush1.msra.mxu0 0.0
    %132 = vmatprep.subr.mxu0 0.0
    %133 = vmatpush1.msra.mxu0 0.0
    %134 = vmatprep.subr.mxu0 0.0
    %135 = vmatpush1.msra.mxu0 0.0
    %136 = vmatprep.subr.mxu0 0.0
    %137 = vmatpush1.msra.mxu0 0.0
    %138 = vmatprep.subr.mxu0 0.0
    %139 = vmatpush1.msra.mxu0 0.0
    %140 = vmatprep.subr.mxu0 0.0
    %141 = vmatpush1.msra.mxu0 0.0
    %142 = vmatprep.subr.mxu0 0.0
    %143 = vmatpush1.msra.mxu0 0.0
    %144 = vmatprep.subr.mxu0 0.0
    %145 = vmatpush1.msra.mxu0 0.0
    %146 = vmatprep.subr.mxu0 0.0
    %147 = vmatpush1.msra.mxu0 0.0
    %148 = vmatprep.subr.mxu0 0.0
    %149 = vmatpush1.msra.mxu0 0.0
    %150 = vmatprep.subr.mxu0 0.0
    %151 = vmatpush1.msra.mxu0 0.0
    %152 = vmatprep.subr.mxu0 0.0
    %153 = vmatpush1.msra.mxu0 0.0
    %154 = vmatprep.subr.mxu0 0.0
    %155 = vmatpush1.msra.mxu0 0.0
    %156 = vmatprep.subr.mxu0 0.0
    %157 = vmatpush1.msra.mxu0 0.0
    %158 = vmatprep.subr.mxu0 0.0
    %159 = vmatpush1.msra.mxu0 0.0
    %160 = vmatprep.subr.mxu0 0.0
    %161 = vmatpush1.msra.mxu0 0.0
    %162 = vmatprep.mubr.f32.mxu0 0.0
    %163 = vmatmul.mubr.f32.gmra.mrb[0].mxu0 %v57
    %v164 = vpop.f32.mrb[0].mxu0
    %v165 = vadd.f32 0.0, %v164
    %v166 = vpop.f32.mrb[0].mxu0
    %167 = vmatprep.mubr.f32.mxu0 0.0
    %168 = vmatmul.mubr.f32.gmra.mrb[0].mxu0 %v60
    %v169 = vpop.f32.mrb[0].mxu0
    %v170 = vadd.f32 0.0, %v169
    %v171 = vpop.f32.mrb[0].mxu0
    %172 = vmatprep.mubr.f32.mxu0 0.0
    %173 = vmatmul.mubr.f32.gmra.mrb[0].mxu0 %v63
    %v174 = vpop.f32.mrb[0].mxu0
    %v175 = vadd.f32 0.0, %v174
    %v176 = vpop.f32.mrb[0].mxu0
    %177 = vmatprep.mubr.f32.mxu0 0.0
    %178 = vmatmul.mubr.f32.gmra.mrb[0].mxu0 %v66
    %v179 = vpop.f32.mrb[0].mxu0
    %v180 = vadd.f32 0.0, %v179
    %v181 = vpop.f32.mrb[0].mxu0
    %182 = vmatprep.mubr.f32.mxu0 0.0
    %183 = vmatmul.mubr.f32.gmra.mrb[0].mxu0 %v69
    %v184 = vpop.f32.mrb[0].mxu0
    %v185 = vadd.f32 0.0, %v184
    %v186 = vpop.f32.mrb[0].mxu0
    %187 = vmatprep.mubr.f32.mxu0 0.0
    %188 = vmatmul.mubr.f32.gmra.mrb[0].mxu0 %v72
    %v189 = vpop.f32.mrb[0].mxu0
    %v190 = vadd.f32 0.0, %v189
    %v191 = vpop.f32.mrb[0].mxu0
    %192 = vmatprep.mubr.f32.mxu0 0.0
    %193 = vmatmul.mubr.f32.gmra.mrb[0].mxu0 %v75
    %v194 = vpop.f32.mrb[0].mxu0
    %v195 = vadd.f32 0.0, %v194
    %v196 = vpop.f32.mrb[0].mxu0
    %197 = vmatprep.mubr.f32.mxu0 0.0
    %198 = vmatmul.mubr.f32.gmra.mrb[0].mxu0 %v78
    %v199 = vpop.f32.mrb[0].mxu0
    %v200 = vadd.f32 0.0, %v199
    %v201 = vpop.f32.mrb[0].mxu0
    %202 = vmatprep.mubr.f32.mxu0 0.0
    %203 = vmatmul.mubr.f32.gmra.mrb[0].mxu0 %v81
    %v204 = vpop.f32.mrb[0].mxu0
    %v205 = vadd.f32 0.0, %v204
    %v206 = vpop.f32.mrb[0].mxu0
    %207 = vmatprep.mubr.f32.mxu0 0.0
    %208 = vmatmul.mubr.f32.gmra.mrb[0].mxu0 %v84
    %v209 = vpop.f32.mrb[0].mxu0
    %v210 = vadd.f32 0.0, %v209
    %v211 = vpop.f32.mrb[0].mxu0
    %212 = vmatprep.mubr.f32.mxu0 0.0
    %213 = vmatmul.mubr.f32.gmra.mrb[0].mxu0 %v87
    %v214 = vpop.f32.mrb[0].mxu0
    %v215 = vadd.f32 0.0, %v214
    %v216 = vpop.f32.mrb[0].mxu0
    %217 = vmatprep.mubr.f32.mxu0 0.0
    %218 = vmatmul.mubr.f32.gmra.mrb[0].mxu0 %v90
    %v219 = vpop.f32.mrb[0].mxu0
    %v220 = vadd.f32 0.0, %v219
    %v221 = vpop.f32.mrb[0].mxu0
    %222 = vmatprep.mubr.f32.mxu0 0.0
    %223 = vmatmul.mubr.f32.gmra.mrb[0].mxu0 %v93
    %v224 = vpop.f32.mrb[0].mxu0
    %v225 = vadd.f32 0.0, %v224
    %v226 = vpop.f32.mrb[0].mxu0
    %227 = vmatprep.mubr.f32.mxu0 0.0
    %228 = vmatmul.mubr.f32.gmra.mrb[0].mxu0 %v96
    %v229 = vpop.f32.mrb[0].mxu0
    %v230 = vadd.f32 0.0, %v229
    %v231 = vpop.f32.mrb[0].mxu0
    %232 = vdwg.mxu0
    %233 = vmatprep.subr.mxu0 0.0
    %234 = vmatpush1.msra.mxu0 %v40
    %235 = vmatprep.subr.mxu0 0.0
    %236 = vmatpush1.msra.mxu0 0.0
    %237 = vmatprep.subr.mxu0 0.0
    %238 = vmatpush1.msra.mxu0 0.0
    %239 = vmatprep.subr.mxu0 0.0
    %240 = vmatpush1.msra.mxu0 0.0
    %241 = vmatprep.subr.mxu0 0.0
    %242 = vmatpush1.msra.mxu0 0.0
    %243 = vmatprep.subr.mxu0 0.0
    %244 = vmatpush1.msra.mxu0 0.0
    %245 = vmatprep.subr.mxu0 0.0
    %246 = vmatpush1.msra.mxu0 0.0
    %247 = vmatprep.subr.mxu0 0.0
    %248 = vmatpush1.msra.mxu0 0.0
    %249 = vmatprep.subr.mxu0 0.0
    %250 = vmatpush1.msra.mxu0 0.0
    %251 = vmatprep.subr.mxu0 0.0
    %252 = vmatpush1.msra.mxu0 0.0
    %253 = vmatprep.subr.mxu0 0.0
    %254 = vmatpush1.msra.mxu0 0.0
    %255 = vmatprep.subr.mxu0 0.0
    %256 = vmatpush1.msra.mxu0 0.0
    %257 = vmatprep.subr.mxu0 0.0
    %258 = vmatpush1.msra.mxu0 0.0
    %259 = vmatprep.subr.mxu0 0.0
    %260 = vmatpush1.msra.mxu0 0.0
    %261 = vmatprep.subr.mxu0 0.0
    %262 = vmatpush1.msra.mxu0 0.0
    %263 = vmatprep.subr.mxu0 0.0
    %264 = vmatpush1.msra.mxu0 0.0
    %265 = vmatprep.subr.mxu0 0.0
    %266 = vmatpush1.msra.mxu0 0.0
    %267 = vmatprep.subr.mxu0 0.0
    %268 = vmatpush1.msra.mxu0 0.0
    %269 = vmatprep.subr.mxu0 0.0
    %270 = vmatpush1.msra.mxu0 0.0
    %271 = vmatprep.subr.mxu0 0.0
    %272 = vmatpush1.msra.mxu0 0.0
    %273 = vmatprep.subr.mxu0 0.0
    %274 = vmatpush1.msra.mxu0 0.0
    %275 = vmatprep.subr.mxu0 0.0
    %276 = vmatpush1.msra.mxu0 0.0
    %277 = vmatprep.subr.mxu0 0.0
    %278 = vmatpush1.msra.mxu0 0.0
    %279 = vmatprep.subr.mxu0 0.0
    %280 = vmatpush1.msra.mxu0 0.0
    %281 = vmatprep.subr.mxu0 0.0
    %282 = vmatpush1.msra.mxu0 0.0
    %283 = vmatprep.subr.mxu0 0.0
    %284 = vmatpush1.msra.mxu0 0.0
    %285 = vmatprep.subr.mxu0 0.0
    %286 = vmatpush1.msra.mxu0 0.0
    %287 = vmatprep.subr.mxu0 0.0
    %288 = vmatpush1.msra.mxu0 0.0
    %289 = vmatprep.subr.mxu0 0.0
    %290 = vmatpush1.msra.mxu0 0.0
    %291 = vmatprep.subr.mxu0 0.0
    %292 = vmatpush1.msra.mxu0 0.0
    %293 = vmatprep.subr.mxu0 0.0
    %294 = vmatpush1.msra.mxu0 0.0
    %295 = vmatprep.subr.mxu0 0.0
    %296 = vmatpush1.msra.mxu0 0.0
    %297 = vmatprep.mubr.f32.mxu0 0.0
    %298 = vmatmul.mubr.f32.gmra.mrb[0].mxu0 %v57
    %v299 = vpop.f32.mrb[0].mxu0
    %v300 = vadd.f32 0.0, %v299
    %v301 = vpop.f32.mrb[0].mxu0
    %302 = vmatprep.mubr.f32.mxu0 0.0
    %303 = vmatmul.mubr.f32.gmra.mrb[0].mxu0 %v60
    %v304 = vpop.f32.mrb[0].mxu0
    %v305 = vadd.f32 0.0, %v304
    %v306 = vpop.f32.mrb[0].mxu0
    %307 = vmatprep.mubr.f32.mxu0 0.0
    %308 = vmatmul.mubr.f32.gmra.mrb[0].mxu0 %v63
    %v309 = vpop.f32.mrb[0].mxu0
    %v310 = vadd.f32 0.0, %v309
    %v311 = vpop.f32.mrb[0].mxu0
    %312 = vmatprep.mubr.f32.mxu0 0.0
    %313 = vmatmul.mubr.f32.gmra.mrb[0].mxu0 %v66
    %v314 = vpop.f32.mrb[0].mxu0
    %v315 = vadd.f32 0.0, %v314
    %v316 = vpop.f32.mrb[0].mxu0
    %317 = vmatprep.mubr.f32.mxu0 0.0
    %318 = vmatmul.mubr.f32.gmra.mrb[0].mxu0 %v69
    %v319 = vpop.f32.mrb[0].mxu0
    %v320 = vadd.f32 0.0, %v319
    %v321 = vpop.f32.mrb[0].mxu0
    %322 = vmatprep.mubr.f32.mxu0 0.0
    %323 = vmatmul.mubr.f32.gmra.mrb[0].mxu0 %v72
    %v324 = vpop.f32.mrb[0].mxu0
    %v325 = vadd.f32 0.0, %v324
    %v326 = vpop.f32.mrb[0].mxu0
    %327 = vmatprep.mubr.f32.mxu0 0.0
    %328 = vmatmul.mubr.f32.gmra.mrb[0].mxu0 %v75
    %v329 = vpop.f32.mrb[0].mxu0
    %v330 = vadd.f32 0.0, %v329
    %v331 = vpop.f32.mrb[0].mxu0
    %332 = vmatprep.mubr.f32.mxu0 0.0
    %333 = vmatmul.mubr.f32.gmra.mrb[0].mxu0 %v78
    %v334 = vpop.f32.mrb[0].mxu0
    %v335 = vadd.f32 0.0, %v334
    %v336 = vpop.f32.mrb[0].mxu0
    %337 = vmatprep.mubr.f32.mxu0 0.0
    %338 = vmatmul.mubr.f32.gmra.mrb[0].mxu0 %v81
    %v339 = vpop.f32.mrb[0].mxu0
    %v340 = vadd.f32 0.0, %v339
    %v341 = vpop.f32.mrb[0].mxu0
    %342 = vmatprep.mubr.f32.mxu0 0.0
    %343 = vmatmul.mubr.f32.gmra.mrb[0].mxu0 %v84
    %v344 = vpop.f32.mrb[0].mxu0
    %v345 = vadd.f32 0.0, %v344
    %v346 = vpop.f32.mrb[0].mxu0
    %347 = vmatprep.mubr.f32.mxu0 0.0
    %348 = vmatmul.mubr.f32.gmra.mrb[0].mxu0 %v87
    %v349 = vpop.f32.mrb[0].mxu0
    %v350 = vadd.f32 0.0, %v349
    %v351 = vpop.f32.mrb[0].mxu0
    %352 = vmatprep.mubr.f32.mxu0 0.0
    %353 = vmatmul.mubr.f32.gmra.mrb[0].mxu0 %v90
    %v354 = vpop.f32.mrb[0].mxu0
    %v355 = vadd.f32 0.0, %v354
    %v356 = vpop.f32.mrb[0].mxu0
    %357 = vmatprep.mubr.f32.mxu0 0.0
    %358 = vmatmul.mubr.f32.gmra.mrb[0].mxu0 %v93
    %v359 = vpop.f32.mrb[0].mxu0
    %v360 = vadd.f32 0.0, %v359
    %v361 = vpop.f32.mrb[0].mxu0
    %362 = vmatprep.mubr.f32.mxu0 0.0
    %363 = vmatmul.mubr.f32.gmra.mrb[0].mxu0 %v96
    %v364 = vpop.f32.mrb[0].mxu0
    %v365 = vadd.f32 0.0, %v364
    %v366 = vpop.f32.mrb[0].mxu0
    %367 = vdwg.mxu0
    %v368 = vld [vmem:[%s2] sm:$0xff]
    %v369 = vld [vmem:[%s2 + $0x8] sm:$0xff]
    %v370 = vld [vmem:[%s2 + $0x10] sm:$0xff]
    %v371 = vld [vmem:[%s2 + $0x18] sm:$0xff]
    %v372 = vld [vmem:[%s2 + $0x20] sm:$0xff]
    %v373 = vld [vmem:[%s2 + $0x28] sm:$0xff]
    %v374 = vld [vmem:[%s2 + $0x30] sm:$0xff]
    %v375 = vld [vmem:[%s2 + $0x38] sm:$0xff]
    %v376 = vld [vmem:[%s2 + $0x40] sm:$0xff]
    %v377 = vld [vmem:[%s2 + $0x48] sm:$0xff]
    %v378 = vld [vmem:[%s2 + $0x50] sm:$0xff]
    %v379 = vld [vmem:[%s2 + $0x58] sm:$0xff]
    %v380 = vld [vmem:[%s2 + $0x60] sm:$0xff]
    %v381 = vld [vmem:[%s2 + $0x68] sm:$0xff]
    %v383 = vsel %vm55, %v368, 0
    %v386 = vsel %vm55, %v369, 0
    %v389 = vsel %vm55, %v370, 0
    %v392 = vsel %vm55, %v371, 0
    %v395 = vsel %vm55, %v372, 0
    %v398 = vsel %vm55, %v373, 0
    %v401 = vsel %vm55, %v374, 0
    %v404 = vsel %vm55, %v375, 0
    %v407 = vsel %vm55, %v376, 0
    %v410 = vsel %vm55, %v377, 0
    %v413 = vsel %vm55, %v378, 0
    %v416 = vsel %vm55, %v379, 0
    %v419 = vsel %vm55, %v380, 0
    %v422 = vsel %vm55, %v381, 0
    %424 = vmatprep.subr.mxu0 0.0
    %425 = vmatpush1.msra.mxu0 %v32
    %426 = vmatprep.subr.mxu0 0.0
    %427 = vmatpush1.msra.mxu0 0.0
    %428 = vmatprep.subr.mxu0 0.0
    %429 = vmatpush1.msra.mxu0 0.0
    %430 = vmatprep.subr.mxu0 0.0
    %431 = vmatpush1.msra.mxu0 0.0
    %432 = vmatprep.subr.mxu0 0.0
    %433 = vmatpush1.msra.mxu0 0.0
    %434 = vmatprep.subr.mxu0 0.0
    %435 = vmatpush1.msra.mxu0 0.0
    %436 = vmatprep.subr.mxu0 0.0
    %437 = vmatpush1.msra.mxu0 0.0
    %438 = vmatprep.subr.mxu0 0.0
    %439 = vmatpush1.msra.mxu0 0.0
    %440 = vmatprep.subr.mxu0 0.0
    %441 = vmatpush1.msra.mxu0 0.0
    %442 = vmatprep.subr.mxu0 0.0
    %443 = vmatpush1.msra.mxu0 0.0
    %444 = vmatprep.subr.mxu0 0.0
    %445 = vmatpush1.msra.mxu0 0.0
    %446 = vmatprep.subr.mxu0 0.0
    %447 = vmatpush1.msra.mxu0 0.0
    %448 = vmatprep.subr.mxu0 0.0
    %449 = vmatpush1.msra.mxu0 0.0
    %450 = vmatprep.subr.mxu0 0.0
    %451 = vmatpush1.msra.mxu0 0.0
    %452 = vmatprep.subr.mxu0 0.0
    %453 = vmatpush1.msra.mxu0 0.0
    %454 = vmatprep.subr.mxu0 0.0
    %455 = vmatpush1.msra.mxu0 0.0
    %456 = vmatprep.subr.mxu0 0.0
    %457 = vmatpush1.msra.mxu0 0.0
    %458 = vmatprep.subr.mxu0 0.0
    %459 = vmatpush1.msra.mxu0 0.0
    %460 = vmatprep.subr.mxu0 0.0
    %461 = vmatpush1.msra.mxu0 0.0
    %462 = vmatprep.subr.mxu0 0.0
    %463 = vmatpush1.msra.mxu0 0.0
    %464 = vmatprep.subr.mxu0 0.0
    %465 = vmatpush1.msra.mxu0 0.0
    %466 = vmatprep.subr.mxu0 0.0
    %467 = vmatpush1.msra.mxu0 0.0
    %468 = vmatprep.subr.mxu0 0.0
    %469 = vmatpush1.msra.mxu0 0.0
    %470 = vmatprep.subr.mxu0 0.0
    %471 = vmatpush1.msra.mxu0 0.0
    %472 = vmatprep.subr.mxu0 0.0
    %473 = vmatpush1.msra.mxu0 0.0
    %474 = vmatprep.subr.mxu0 0.0
    %475 = vmatpush1.msra.mxu0 0.0
    %476 = vmatprep.subr.mxu0 0.0
    %477 = vmatpush1.msra.mxu0 0.0
    %478 = vmatprep.subr.mxu0 0.0
    %479 = vmatpush1.msra.mxu0 0.0
    %480 = vmatprep.subr.mxu0 0.0
    %481 = vmatpush1.msra.mxu0 0.0
    %482 = vmatprep.subr.mxu0 0.0
    %483 = vmatpush1.msra.mxu0 0.0
    %484 = vmatprep.subr.mxu0 0.0
    %485 = vmatpush1.msra.mxu0 0.0
    %486 = vmatprep.subr.mxu0 0.0
    %487 = vmatpush1.msra.mxu0 0.0
    %488 = vmatprep.mubr.f32.mxu0 0.0
    %489 = vmatmul.mubr.f32.gmra.mrb[0].mxu0 %v383
    %v490 = vpop.f32.mrb[0].mxu0
    %v491 = vadd.f32 0.0, %v490
    %v492 = vpop.f32.mrb[0].mxu0
    %493 = vmatprep.mubr.f32.mxu0 0.0
    %494 = vmatmul.mubr.f32.gmra.mrb[0].mxu0 %v386
    %v495 = vpop.f32.mrb[0].mxu0
    %v496 = vadd.f32 0.0, %v495
    %v497 = vpop.f32.mrb[0].mxu0
    %498 = vmatprep.mubr.f32.mxu0 0.0
    %499 = vmatmul.mubr.f32.gmra.mrb[0].mxu0 %v389
    %v500 = vpop.f32.mrb[0].mxu0
    %v501 = vadd.f32 0.0, %v500
    %v502 = vpop.f32.mrb[0].mxu0
    %503 = vmatprep.mubr.f32.mxu0 0.0
    %504 = vmatmul.mubr.f32.gmra.mrb[0].mxu0 %v392
    %v505 = vpop.f32.mrb[0].mxu0
    %v506 = vadd.f32 0.0, %v505
    %v507 = vpop.f32.mrb[0].mxu0
    %508 = vmatprep.mubr.f32.mxu0 0.0
    %509 = vmatmul.mubr.f32.gmra.mrb[0].mxu0 %v395
    %v510 = vpop.f32.mrb[0].mxu0
    %v511 = vadd.f32 0.0, %v510
    %v512 = vpop.f32.mrb[0].mxu0
    %513 = vmatprep.mubr.f32.mxu0 0.0
    %514 = vmatmul.mubr.f32.gmra.mrb[0].mxu0 %v398
    %v515 = vpop.f32.mrb[0].mxu0
    %v516 = vadd.f32 0.0, %v515
    %v517 = vpop.f32.mrb[0].mxu0
    %518 = vmatprep.mubr.f32.mxu0 0.0
    %519 = vmatmul.mubr.f32.gmra.mrb[0].mxu0 %v401
    %v520 = vpop.f32.mrb[0].mxu0
    %v521 = vadd.f32 0.0, %v520
    %v522 = vpop.f32.mrb[0].mxu0
    %523 = vmatprep.mubr.f32.mxu0 0.0
    %524 = vmatmul.mubr.f32.gmra.mrb[0].mxu0 %v404
    %v525 = vpop.f32.mrb[0].mxu0
    %v526 = vadd.f32 0.0, %v525
    %v527 = vpop.f32.mrb[0].mxu0
    %528 = vmatprep.mubr.f32.mxu0 0.0
    %529 = vmatmul.mubr.f32.gmra.mrb[0].mxu0 %v407
    %v530 = vpop.f32.mrb[0].mxu0
    %v531 = vadd.f32 0.0, %v530
    %v532 = vpop.f32.mrb[0].mxu0
    %533 = vmatprep.mubr.f32.mxu0 0.0
    %534 = vmatmul.mubr.f32.gmra.mrb[0].mxu0 %v410
    %v535 = vpop.f32.mrb[0].mxu0
    %v536 = vadd.f32 0.0, %v535
    %v537 = vpop.f32.mrb[0].mxu0
    %538 = vmatprep.mubr.f32.mxu0 0.0
    %539 = vmatmul.mubr.f32.gmra.mrb[0].mxu0 %v413
    %v540 = vpop.f32.mrb[0].mxu0
    %v541 = vadd.f32 0.0, %v540
    %v542 = vpop.f32.mrb[0].mxu0
    %543 = vmatprep.mubr.f32.mxu0 0.0
    %544 = vmatmul.mubr.f32.gmra.mrb[0].mxu0 %v416
    %v545 = vpop.f32.mrb[0].mxu0
    %v546 = vadd.f32 0.0, %v545
    %v547 = vpop.f32.mrb[0].mxu0
    %548 = vmatprep.mubr.f32.mxu0 0.0
    %549 = vmatmul.mubr.f32.gmra.mrb[0].mxu0 %v419
    %v550 = vpop.f32.mrb[0].mxu0
    %v551 = vadd.f32 0.0, %v550
    %v552 = vpop.f32.mrb[0].mxu0
    %553 = vmatprep.mubr.f32.mxu0 0.0
    %554 = vmatmul.mubr.f32.gmra.mrb[0].mxu0 %v422
    %v555 = vpop.f32.mrb[0].mxu0
    %v556 = vadd.f32 0.0, %v555
    %v557 = vpop.f32.mrb[0].mxu0
    %558 = vdwg.mxu0
    %v559 = vmul.f32 %v165, %v200
    %v560 = vmul.f32 %v170, %v205
    %v561 = vmul.f32 %v175, %v210
    %v562 = vmul.f32 %v180, %v215
    %v563 = vmul.f32 %v185, %v220
    %v564 = vmul.f32 %v190, %v225
    %v565 = vmul.f32 %v195, %v230
    %v566 = vadd.f32 %v559, %v560
    %v567 = vadd.f32 %v566, %v561
    %v568 = vadd.f32 %v567, %v562
    %v569 = vadd.f32 %v568, %v563
    %v570 = vadd.f32 %v569, %v564
    %v571 = vadd.f32 %v570, %v565
    %v572 = vrot.slane %v571, 4
    %v573 = vadd.f32 %v571, %v572
    %v574 = vrot.slane %v573, 2
    %v575 = vadd.f32 %v573, %v574
    %v576 = vrot.slane %v575, 1
    %v577 = vadd.f32 %v575, %v576
    %v578 = vmul.f32 %v577, %v200
    %v579 = vmul.f32 %v577, %v205
    %v580 = vmul.f32 %v577, %v210
    %v581 = vmul.f32 %v577, %v215
    %v582 = vmul.f32 %v577, %v220
    %v583 = vmul.f32 %v577, %v225
    %v584 = vmul.f32 %v577, %v230
    %v585 = vsub.f32 %v165, %v578
    %v586 = vsub.f32 %v170, %v579
    %v587 = vsub.f32 %v175, %v580
    %v588 = vsub.f32 %v180, %v581
    %v589 = vsub.f32 %v185, %v582
    %v590 = vsub.f32 %v190, %v583
    %v591 = vsub.f32 %v195, %v584
    %v592 = vmul.f32 %v300, %v335
    %v593 = vmul.f32 %v305, %v340
    %v594 = vmul.f32 %v310, %v345
    %v595 = vmul.f32 %v315, %v350
    %v596 = vmul.f32 %v320, %v355
    %v597 = vmul.f32 %v325, %v360
    %v598 = vmul.f32 %v330, %v365
    %v599 = vadd.f32 %v592, %v593
    %v600 = vadd.f32 %v599, %v594
    %v601 = vadd.f32 %v600, %v595
    %v602 = vadd.f32 %v601, %v596
    %v603 = vadd.f32 %v602, %v597
    %v604 = vadd.f32 %v603, %v598
    %v605 = vrot.slane %v604, 4
    %v606 = vadd.f32 %v604, %v605
    %v607 = vrot.slane %v606, 2
    %v608 = vadd.f32 %v606, %v607
    %v609 = vrot.slane %v608, 1
    %v610 = vadd.f32 %v608, %v609
    %v611 = vmul.f32 %v610, %v335
    %v612 = vmul.f32 %v610, %v340
    %v613 = vmul.f32 %v610, %v345
    %v614 = vmul.f32 %v610, %v350
    %v615 = vmul.f32 %v610, %v355
    %v616 = vmul.f32 %v610, %v360
    %v617 = vmul.f32 %v610, %v365
    %v618 = vsub.f32 %v300, %v611
    %v619 = vsub.f32 %v305, %v612
    %v620 = vsub.f32 %v310, %v613
    %v621 = vsub.f32 %v315, %v614
    %v622 = vsub.f32 %v320, %v615
    %v623 = vsub.f32 %v325, %v616
    %v624 = vsub.f32 %v330, %v617
    %v625 = vmul.f32 %v491, %v526
    %v626 = vmul.f32 %v496, %v531
    %v627 = vmul.f32 %v501, %v536
    %v628 = vmul.f32 %v506, %v541
    %v629 = vmul.f32 %v511, %v546
    %v630 = vmul.f32 %v516, %v551
    %v631 = vmul.f32 %v521, %v556
    %v632 = vadd.f32 %v625, %v626
    %v633 = vadd.f32 %v632, %v627
    %v634 = vadd.f32 %v633, %v628
    %v635 = vadd.f32 %v634, %v629
    %v636 = vadd.f32 %v635, %v630
    %v637 = vadd.f32 %v636, %v631
    %v638 = vrot.slane %v637, 4
    %v639 = vadd.f32 %v637, %v638
    %v640 = vrot.slane %v639, 2
    %v641 = vadd.f32 %v639, %v640
    %v642 = vrot.slane %v641, 1
    %v643 = vadd.f32 %v641, %v642
    %v644 = vmul.f32 %v643, %v526
    %v645 = vmul.f32 %v643, %v531
    %v646 = vmul.f32 %v643, %v536
    %v647 = vmul.f32 %v643, %v541
    %v648 = vmul.f32 %v643, %v546
    %v649 = vmul.f32 %v643, %v551
    %v650 = vmul.f32 %v643, %v556
    %v651 = vsub.f32 %v491, %v644
    %v652 = vsub.f32 %v496, %v645
    %v653 = vsub.f32 %v501, %v646
    %v654 = vsub.f32 %v506, %v647
    %v655 = vsub.f32 %v511, %v648
    %v656 = vsub.f32 %v516, %v649
    %v657 = vsub.f32 %v521, %v650
    %v658 = vadd.f32 %v585, %v651
    %v659 = vadd.f32 %v586, %v652
    %v660 = vadd.f32 %v587, %v653
    %v661 = vadd.f32 %v588, %v654
    %v662 = vadd.f32 %v589, %v655
    %v663 = vadd.f32 %v590, %v656
    %v664 = vadd.f32 %v591, %v657
    %v665 = vsub.f32 %v658, %v618
    %v666 = vsub.f32 %v659, %v619
    %v667 = vsub.f32 %v660, %v620
    %v668 = vsub.f32 %v661, %v621
    %v669 = vsub.f32 %v662, %v622
    %v670 = vsub.f32 %v663, %v623
    %v671 = vsub.f32 %v664, %v624
    %v672 = vmul.f32 %v665, %v665
    %v673 = vmul.f32 %v666, %v666
    %v674 = vmul.f32 %v667, %v667
    %v675 = vmul.f32 %v668, %v668
    %v676 = vmul.f32 %v669, %v669
    %v677 = vmul.f32 %v670, %v670
    %v678 = vmul.f32 %v671, %v671
    %v679 = vadd.f32 %v672, %v673
    %v680 = vadd.f32 %v679, %v674
    %v681 = vadd.f32 %v680, %v675
    %v682 = vadd.f32 %v681, %v676
    %v683 = vadd.f32 %v682, %v677
    %v684 = vadd.f32 %v683, %v678
    %v685 = vrot.slane %v684, 4
    %v686 = vadd.f32 %v684, %v685
    %v687 = vrot.slane %v686, 2
    %v688 = vadd.f32 %v686, %v687
    %v689 = vrot.slane %v688, 1
    %v690 = vadd.f32 %v688, %v689
    %v691 = vrsqrt.pop %v690
    %v692 = vmul.f32 %v690, %v691
    %vm693 = vcmp.eq.f32.partialorder %v690, inf
    %v694 = vsel %vm693, %v690, %v692
    %vm695 = vcmp.eq.f32.partialorder %v690, 0.0
    %v696 = vand.u32 %v690, 2147483648
    %v697 = vsel %vm695, %v696, %v694
    %698 = vst [vmem:[#allocation2] sm:$0x1] %v697
    // Predicated region
    $region14: #{tpu_custom_call.1} parent=1 // pred_check
      _
    $region15: #{tpu_custom_call.1} parent=1 // pred_check_branch
      %700 = sbr.rel (0) target = $region17
    $region16: #{tpu_custom_call.1} parent=1 // pred_region
      %s702 = ssub.s32 16, 16
      %703 = vsyncadd [#allocation3], %s702
      %s705 = sshll.u32 [#allocation2], 4
      %s706 = int_to_ptr.vmem [resolvable:$true] %s705
      %708 = dma.vmem_to_hbm [thread:$0]  %s706, 16, %s3, [#allocation3]
    $region17: #{tpu_custom_call.1} parent=1 // pred_fallthru
      _
    // Predicated region
    $region18: #{tpu_custom_call.1} parent=1 // pred_check
      _
    $region19: #{tpu_custom_call.1} parent=1 // pred_check_branch
      %710 = sbr.rel (0) target = $region21
    $region20: #{tpu_custom_call.1} parent=1 // pred_region
      %711 = dma.done [#allocation3], 16
    $region21: #{tpu_custom_call.1} parent=1 // pred_fallthru
      _
    %712 = vsyncpa [#allocation3], 1

</llo_original>
